<compile_context>
chip_gen: v5e
topology: v5e:2x2
jax: 0.10.0
libtpu: 0.0.40
codegen_flags: <defaults>
</compile_context>

<pallas_src>
import jax
import jax.numpy as jnp
from jax import lax
from jax.experimental import pallas as pl
from jax.experimental.pallas import tpu as pltpu

EPS = 1e-5  # torch.nn.LayerNorm default


def _make_addnorm_kernel(width, d_model, fold, tm, chunk):
    """Kernel body for one (tm, width) row block.

    width   : lane width of a block row (= fold * d_model; 128 when folded)
    d_model : LayerNorm feature size (reduction segment length)
    fold    : original rows packed side-by-side into one lane row (1 = none)
    tm      : rows per grid block
    chunk   : rows per in-kernel compute pass (bounds the f32 working set)
    """
    inv_d = 1.0 / float(d_model)

    def kernel(y_ref, x_ref, gb_ref, o_ref):
        g = gb_ref[0:1, :].astype(jnp.float32)   # (1, width)
        b = gb_ref[1:2, :].astype(jnp.float32)   # (1, width)

        if fold > 1:
            # Block-diagonal ones matrix: seg_mat[l, j] = 1 iff lanes l and j
            # belong to the same d_model segment. (s @ seg_mat)[i, j] is the
            # segment sum broadcast across the segment -> per-row LayerNorm
            # stats without any cross-lane relayout (runs on the idle MXU).
            li = lax.broadcasted_iota(jnp.int32, (width, width), 0) // d_model
            lj = lax.broadcasted_iota(jnp.int32, (width, width), 1) // d_model
            seg_mat = (li == lj).astype(jnp.float32)

        def process(r0, rows):
            # residual add, accumulate in f32
            s = (x_ref[pl.ds(r0, rows), :].astype(jnp.float32)
                 + y_ref[pl.ds(r0, rows), :].astype(jnp.float32))
            if fold > 1:
                mean = lax.dot(s, seg_mat, precision=lax.Precision.HIGHEST,
                               preferred_element_type=jnp.float32) * inv_d
                c = s - mean
                var = lax.dot(c * c, seg_mat, precision=lax.Precision.HIGHEST,
                              preferred_element_type=jnp.float32) * inv_d
            else:
                # LayerNorm over lanes (biased variance, like torch)
                mean = jnp.mean(s, axis=-1, keepdims=True)
                c = s - mean
                var = jnp.mean(c * c, axis=-1, keepdims=True)
            inv = lax.rsqrt(var + EPS)
            out = (c * inv) * g + b
            # dropout: identity (eval mode)
            o_ref[pl.ds(r0, rows), :] = out.astype(o_ref.dtype)

        n_full = tm // chunk
        rem = tm - n_full * chunk
        if n_full == 1 and rem == 0:
            process(0, chunk)                       # small block: single pass
        else:
            if n_full > 0:
                def body(ci, carry):
                    process(pl.multiple_of(ci * chunk, 8), chunk)
                    return carry
                lax.fori_loop(0, n_full, body, 0)
            if rem > 0:
                process(n_full * chunk, rem)        # static tail chunk

    return kernel


def _vmem_budgets():
    """(per-operand streamed block byte target, vmem_limit_bytes) per chip gen."""
    try:
        cap = int(getattr(pltpu.get_tpu_info(), "vmem_capacity_bytes", 64 << 20))
    except Exception:  # pragma: no cover - conservative fallback
        cap = 64 << 20
    if cap >= (96 << 20):
        # v5e / v6e (128 MiB VMEM, <=1.4 TB/s HBM): 4 MiB per streamed operand
        # (x6 double-buffered X/Y/out = 24 MiB) keeps step overhead <5% with
        # lots of headroom under a 64 MiB scoped limit.
        return 4 << 20, 64 << 20
    # v7x-class (64 MiB VMEM per TC, 3.2 TB/s HBM): ~8 MiB blocks are needed
    # to amortize the ~0.35 us step cost; compute is chunked so f32 temps stay
    # ~1-2 MiB and 6x8 MiB buffers + temps fit under a 56 MiB limit.
    return 8 << 20, 56 << 20


def _pick_tiles(n_rows, width, itemsize, per_operand_bytes, row_tile=None):
    """Pick (rows per grid block, rows per in-kernel compute chunk)."""
    pack = max(8, 32 // max(itemsize, 1))      # sublane packing for the dtype
    row_bytes = width * itemsize
    # rows per compute chunk: bound each f32 temporary to ~256 KiB
    chunk = max(pack, ((256 << 10) // max(4 * width, 1)) // pack * pack)

    if row_tile is not None:
        tm = max(1, min(int(row_tile), n_rows))
    else:
        tm = max(pack, (per_operand_bytes // max(row_bytes, 1)) // pack * pack)

    if tm >= n_rows:
        if n_rows >= 2 * pack:
            # keep >= 2 grid steps so the "parallel" grid feeds both of v7x's
            # TensorCores and DMA overlaps compute.
            tm = max(pack, (n_rows // 2) // pack * pack)
        else:
            tm = n_rows                        # tiny problem: one full block
    elif n_rows % tm != 0:
        # prefer a tile that divides n_rows (no masked ragged tail), but only
        # if it doesn't shrink the tile by more than 2x.
        t = tm
        while t >= pack and n_rows % t != 0:
            t -= pack
        if t >= max(pack, tm // 2):
            tm = t

    chunk = min(chunk, tm)
    return tm, chunk


def add_norm(Y, X, gamma, beta, *, row_tile=None):
    """dropout(LayerNorm(X + Y)) with dropout in eval mode (identity)."""
    assert X.shape == Y.shape
    *lead, d_model = X.shape
    n_rows = 1
    for s_ in lead:
        n_rows *= int(s_)
    n_rows = max(n_rows, 1)

    # Lane folding for narrow feature sizes: pack `fold` consecutive rows into
    # one 128-lane row so every load/store is full lane width.
    fold = 1
    if d_model < 128 and 128 % d_model == 0 and n_rows % (128 // d_model) == 0:
        fold = 128 // d_model
    width = fold * d_model
    n_frows = n_rows // fold

    x2 = X.reshape(n_frows, width)
    y2 = Y.reshape(n_frows, width)
    g1 = gamma.reshape(-1)
    b1 = beta.reshape(-1)
    if fold > 1:
        g1 = jnp.tile(g1, fold)
        b1 = jnp.tile(b1, fold)
    gb = jnp.stack([g1, b1])                   # (2, width), resident in VMEM

    itemsize = jnp.dtype(X.dtype).itemsize
    per_operand, vmem_limit = _vmem_budgets()
    tm, chunk = _pick_tiles(n_frows, width, itemsize, per_operand, row_tile)

    grid = (pl.cdiv(n_frows, tm),)             # ragged tail (if any) is masked

    kernel = _make_addnorm_kernel(width, d_model, fold, tm, chunk)

    out = pl.pallas_call(
        kernel,
        out_shape=jax.ShapeDtypeStruct((n_frows, width), X.dtype),
        grid_spec=pltpu.PrefetchScalarGridSpec(
            num_scalar_prefetch=0,
            grid=grid,
            in_specs=[
                pl.BlockSpec((tm, width), lambda i: (i, 0)),   # Y rows
                pl.BlockSpec((tm, width), lambda i: (i, 0)),   # X rows
                pl.BlockSpec((2, width), lambda i: (0, 0)),    # gamma/beta
            ],
            out_specs=pl.BlockSpec((tm, width), lambda i: (i, 0)),
        ),
        compiler_params=pltpu.CompilerParams(
            dimension_semantics=("parallel",),  # shard rows across v7x's 2 TCs
            vmem_limit_bytes=vmem_limit,
        ),
    )(y2, x2, gb)

    return out.reshape(*lead, d_model)


if __name__ == "__main__":
    key = jax.random.PRNGKey(0)

    def ref_addnorm(Y, X, gamma, beta):
        s = X + Y
        mean = jnp.mean(s, axis=-1, keepdims=True)
        var = jnp.mean((s - mean) ** 2, axis=-1, keepdims=True)
        return (s - mean) / jnp.sqrt(var + EPS) * gamma + beta

    shapes = [
        (2, 8, 128),   # d_model directly on lanes, 2 grid steps
        (2, 8, 32),    # lane-folded path (4 rows per 128-lane row, MXU stats)
        (3, 7, 256),   # row count not a multiple of the tile -> masked tail
    ]
    for (batch, seq, d_model) in shapes:
        kx, ky, kg, kb, key = jax.random.split(key, 5)
        X = jax.random.normal(kx, (batch, seq, d_model), dtype=jnp.float32)
        Y = jax.random.normal(ky, (batch, seq, d_model), dtype=jnp.float32)
        # non-trivial affine params to exercise the gamma/beta path
        gamma = 1.0 + 0.1 * jax.random.normal(kg, (d_model,), dtype=jnp.float32)
        beta = 0.1 * jax.random.normal(kb, (d_model,), dtype=jnp.float32)

        out = jax.block_until_ready(add_norm(Y, X, gamma, beta))
        ref = ref_addnorm(Y, X, gamma, beta)
        assert out.shape == X.shape
        err = jnp.max(jnp.abs(out - ref))
        assert jnp.allclose(out, ref, atol=1e-4, rtol=1e-5), (
            f"mismatch vs reference for shape {(batch, seq, d_model)}; "
            f"max abs err = {err}"
        )

    print("KERNEL_OK")
</pallas_src>

<mosaic_0001>
module attributes {stable_mosaic.version = 11 : i64} {
  func.func @kernel(%arg0: i32, %arg1: memref<8x128xf32, #tpu.memory_space<vmem>>, %arg2: memref<8x128xf32, #tpu.memory_space<vmem>>, %arg3: memref<2x128xf32, #tpu.memory_space<vmem>>, %arg4: memref<8x128xf32, #tpu.memory_space<vmem>>) attributes {dimension_semantics = [#tpu.dimension_semantics<parallel>], iteration_bounds = array<i64: 2>, scalar_prefetch = 0 : i64, scratch_operands = 0 : i64, tpu.core_type = #tpu.core_type<tc>, window_params = [{transform_indices = @transform_0, window_bounds = array<i64: 8, 128>}, {transform_indices = @transform_1, window_bounds = array<i64: 8, 128>}, {pipeline_mode = #tpu.pipeline_mode<synchronous>, transform_indices = @transform_2, window_bounds = array<i64: 2, 128>}, {transform_indices = @transform_3, window_bounds = array<i64: 8, 128>}]} {
    %c0 = arith.constant 0 : index
    %c0_0 = arith.constant 0 : index
    %0 = vector.load %arg3[%c0, %c0_0] : memref<2x128xf32, #tpu.memory_space<vmem>>, vector<1x128xf32>
    %c1 = arith.constant 1 : index
    %c0_1 = arith.constant 0 : index
    %1 = vector.load %arg3[%c1, %c0_1] : memref<2x128xf32, #tpu.memory_space<vmem>>, vector<1x128xf32>
    %c0_2 = arith.constant 0 : index
    %c0_3 = arith.constant 0 : index
    %2 = vector.load %arg2[%c0_2, %c0_3] : memref<8x128xf32, #tpu.memory_space<vmem>>, vector<8x128xf32>
    %c0_4 = arith.constant 0 : index
    %c0_5 = arith.constant 0 : index
    %3 = vector.load %arg1[%c0_4, %c0_5] : memref<8x128xf32, #tpu.memory_space<vmem>>, vector<8x128xf32>
    %4 = arith.addf %2, %3 : vector<8x128xf32>
    %cst = arith.constant dense<0.000000e+00> : vector<8xf32>
    %5 = vector.multi_reduction <add>, %4, %cst [1] : vector<8x128xf32> to vector<8xf32>
    %6 = vector.shape_cast %5 : vector<8xf32> to vector<8x1xf32>
    %cst_6 = arith.constant 1.280000e+02 : f32
    %7 = vector.broadcast %cst_6 : f32 to vector<8x1xf32>
    %8 = arith.divf %6, %7 : vector<8x1xf32>
    %9 = vector.broadcast %8 : vector<8x1xf32> to vector<8x128xf32>
    %10 = arith.subf %4, %9 : vector<8x128xf32>
    %11 = arith.mulf %10, %10 : vector<8x128xf32>
    %cst_7 = arith.constant dense<0.000000e+00> : vector<8xf32>
    %12 = vector.multi_reduction <add>, %11, %cst_7 [1] : vector<8x128xf32> to vector<8xf32>
    %13 = vector.shape_cast %12 : vector<8xf32> to vector<8x1xf32>
    %cst_8 = arith.constant 1.280000e+02 : f32
    %14 = vector.broadcast %cst_8 : f32 to vector<8x1xf32>
    %15 = arith.divf %13, %14 : vector<8x1xf32>
    %cst_9 = arith.constant 9.99999974E-6 : f32
    %16 = vector.broadcast %cst_9 : f32 to vector<8x1xf32>
    %17 = arith.addf %15, %16 : vector<8x1xf32>
    %18 = math.rsqrt %17 : vector<8x1xf32>
    %19 = vector.broadcast %18 : vector<8x1xf32> to vector<8x128xf32>
    %20 = arith.mulf %10, %19 : vector<8x128xf32>
    %21 = vector.broadcast %0 : vector<1x128xf32> to vector<8x128xf32>
    %22 = arith.mulf %20, %21 : vector<8x128xf32>
    %23 = vector.broadcast %1 : vector<1x128xf32> to vector<8x128xf32>
    %24 = arith.addf %22, %23 : vector<8x128xf32>
    %c0_10 = arith.constant 0 : index
    %c0_11 = arith.constant 0 : index
    %25 = vector.load %arg4[%c0_10, %c0_11] : memref<8x128xf32, #tpu.memory_space<vmem>>, vector<8x128xf32>
    tpu.vector_store %arg4[%c0_10, %c0_11], %24 {strides = array<i32>} : memref<8x128xf32, #tpu.memory_space<vmem>>, vector<8x128xf32>,
    return
  }
  func.func @transform_0(%arg0: i32) -> (i32, i32) {
    %c0_i32 = arith.constant 0 : i32
    %c0_i32_0 = arith.constant 0 : i32
    return %arg0, %c0_i32 : i32, i32
  }
  func.func @transform_1(%arg0: i32) -> (i32, i32) {
    %c0_i32 = arith.constant 0 : i32
    %c0_i32_0 = arith.constant 0 : i32
    return %arg0, %c0_i32 : i32, i32
  }
  func.func @transform_2(%arg0: i32) -> (i32, i32) {
    %c0_i32 = arith.constant 0 : i32
    %c0_i32_0 = arith.constant 0 : i32
    %c0_i32_1 = arith.constant 0 : i32
    return %c0_i32, %c0_i32_0 : i32, i32
  }
  func.func @transform_3(%arg0: i32) -> (i32, i32) {
    %c0_i32 = arith.constant 0 : i32
    %c0_i32_0 = arith.constant 0 : i32
    return %arg0, %c0_i32 : i32, i32
  }
}

</mosaic_0001>

<llo_original>
// kernel: tpu_custom_call.1
$region0: #{tpu_custom_call.1}
  #allocation0 [shape = 'u32[]', space=smem, size = 0x4, offset = 0x4, fixed_abs, tag = 'smem constant byte address 0x4 - core index']
  #allocation1 [shape = 'u32[72,128]{1,0:T(1,128)}', space=vmem, size = 0x9000, scoped, tag = 'internal scratch']
  %s0 = inlined_call_operand.hbm [shape: f32[16,128], index: 0, kind: input, shape index: {}]
  %s1 = inlined_call_operand.hbm [shape: f32[16,128], index: 1, kind: input, shape index: {}]
  %s2 = inlined_call_operand.hbm [shape: f32[2,128], index: 2, kind: input, shape index: {}]
  %s3 = inlined_call_operand.hbm [shape: f32[16,128], index: 3, kind: output, shape index: {}]
  %s4 = sld [smem:[#allocation0]]
  $region57: #{tpu_custom_call.1} parent=0
    _
  %s6 = ssub.s32 1, %s4
  %s7 = scalar_select 0, %s6, %s4
  $region1: #{tpu_custom_call.1} parent=0
    #allocation2 [shape = 'u8[8192]{0}', space=vmem, size = 0x2000, scoped, tag = 'input window, operand 0']
    #allocation3 [shape = 's32[2]{0}', space=sflag, size = 0x8, scoped, tag = 'scoped memory for tpu_custom_call.1']
    #allocation4 [shape = 's32[2]{0}', space=sflag, size = 0x8, scoped, tag = 'scoped memory for tpu_custom_call.1']
    #allocation5 [shape = 'u8[8192]{0}', space=vmem, size = 0x2000, scoped, tag = 'input window, operand 1']
    #allocation6 [shape = 's32[2]{0}', space=sflag, size = 0x8, scoped, tag = 'scoped memory for tpu_custom_call.1']
    #allocation7 [shape = 'u8[1024]{0}', space=vmem, size = 0x400, scoped, tag = 'input window, operand 2, single buffered']
    #allocation8 [shape = 'u8[8192]{0}', space=vmem, size = 0x2000, scoped, tag = 'output window, operand 0']
    %8 = vsyncpa [#allocation3], 0
    %s9 = scalar_lea.sflag [#allocation3], 1
    %10 = vsyncpa %s9, 0
    %11 = vsyncpa [#allocation6], 0
    %s12 = scalar_lea.sflag [#allocation6], 1
    %13 = vsyncpa %s12, 0
    %14 = vsyncpa [#allocation4], 0
    %s15 = scalar_lea.sflag [#allocation4], 1
    %16 = vsyncpa %s15, 0
    loop: start=0, step=1, limit=4
    $region2: #{tpu_custom_call.1} parent=1 // loop_pre_header
      _
    $region3: #{tpu_custom_call.1} parent=1 // loop_header
      %s18 = sphi 0, %s22
      %p19 = scmp.ge.s32.totalorder %s18, 4
      %s28 = sphi 0, %s30
      %s31 = sphi 0, %s28
      %s32 = sphi 0, %s31
      %s48 = sphi 0, %s32
      %s54 = sphi 0, %s56
      %s57 = sphi 0, %s54
      %s58 = sphi 0, %s57
      %s74 = sphi 0, %s58
      %s78 = sphi 0, %s78
      %s80 = sphi 0, %s78
      %s81 = sphi 0, %s80
      %s95 = sphi 0, %s81
      %s101 = sphi 0, %s103
      %s104 = sphi 0, %s101
      %s105 = sphi 0, %s104
      %s121 = sphi 0, %s105
    $region4: #{tpu_custom_call.1} parent=1 // loop_header_branch
      %21 = sbr.rel (%p19) target = $region8
    $region5: #{tpu_custom_call.1} parent=1 // loop_body
      %s23 = ssub.s32 %s18, 1
      %s24 = ssub.s32 %s18, 2
      %s25 = sadd.s32 %s18, 1
      %s26 = ssub.s32 %s18, %s25
      %p27 = scmp.eq.s32.totalorder %s26, 0
      %s29 = sadd.s32 %s28, 1
      %s30 = scalar_select %p27, %s28, %s29
      %p33 = pneg %p27
      %p34 = scmp.eq.s32.totalorder %s18, 1
      %p35 = por %p33, %p34
      %p36 = scmp.ne.s32.totalorder %s28, %s31
      %p37 = scmp.eq.s32.totalorder %s18, 0
      %p38 = por %p36, %p37
      %p39 = scmp.ne.s32.totalorder %s28, %s31
      %p40 = scmp.eq.s32.totalorder %s23, 1
      %p41 = por %p39, %p40
      %p42 = scmp.ne.s32.totalorder %s31, %s32
      %p43 = scmp.eq.s32.totalorder %s23, 0
      %p44 = por %p42, %p43
      %p45 = scmp.ne.s32.totalorder %s31, %s32
      %p46 = scmp.eq.s32.totalorder %s24, 1
      %p47 = por %p45, %p46
      %p49 = scmp.ne.s32.totalorder %s32, %s48
      %p50 = scmp.eq.s32.totalorder %s24, 0
      %p51 = por %p49, %p50
      %s52 = ssub.s32 %s18, %s25
      %p53 = scmp.eq.s32.totalorder %s52, 0
      %s55 = sadd.s32 %s54, 1
      %s56 = scalar_select %p53, %s54, %s55
      %p59 = pneg %p53
      %p60 = scmp.eq.s32.totalorder %s18, 1
      %p61 = por %p59, %p60
      %p62 = scmp.ne.s32.totalorder %s54, %s57
      %p63 = scmp.eq.s32.totalorder %s18, 0
      %p64 = por %p62, %p63
      %p65 = scmp.ne.s32.totalorder %s54, %s57
      %p66 = scmp.eq.s32.totalorder %s23, 1
      %p67 = por %p65, %p66
      %p68 = scmp.ne.s32.totalorder %s57, %s58
      %p69 = scmp.eq.s32.totalorder %s23, 0
      %p70 = por %p68, %p69
      %p71 = scmp.ne.s32.totalorder %s57, %s58
      %p72 = scmp.eq.s32.totalorder %s24, 1
      %p73 = por %p71, %p72
      %p75 = scmp.ne.s32.totalorder %s58, %s74
      %p76 = scmp.eq.s32.totalorder %s24, 0
      %p77 = por %p75, %p76
      %s79 = sadd.s32 %s78, 1
      %p82 = scmp.eq.s32.totalorder %s18, 1
      %p83 = scmp.ne.s32.totalorder %s78, %s80
      %p84 = scmp.eq.s32.totalorder %s18, 0
      %p85 = por %p83, %p84
      %p86 = scmp.ne.s32.totalorder %s78, %s80
      %p87 = scmp.eq.s32.totalorder %s23, 1
      %p88 = por %p86, %p87
      %p89 = scmp.ne.s32.totalorder %s80, %s81
      %p90 = scmp.eq.s32.totalorder %s23, 0
      %p91 = por %p89, %p90
      %p92 = scmp.ne.s32.totalorder %s80, %s81
      %p93 = scmp.eq.s32.totalorder %s24, 1
      %p94 = por %p92, %p93
      %p96 = scmp.ne.s32.totalorder %s81, %s95
      %p97 = scmp.eq.s32.totalorder %s24, 0
      %p98 = por %p96, %p97
      %s99 = ssub.s32 %s18, %s25
      %p100 = scmp.eq.s32.totalorder %s99, 0
      %s102 = sadd.s32 %s101, 1
      %s103 = scalar_select %p100, %s101, %s102
      %p106 = pneg %p100
      %p107 = scmp.eq.s32.totalorder %s18, 1
      %p108 = por %p106, %p107
      %p109 = scmp.ne.s32.totalorder %s101, %s104
      %p110 = scmp.eq.s32.totalorder %s18, 0
      %p111 = por %p109, %p110
      %p112 = scmp.ne.s32.totalorder %s101, %s104
      %p113 = scmp.eq.s32.totalorder %s23, 1
      %p114 = por %p112, %p113
      %p115 = scmp.ne.s32.totalorder %s104, %s105
      %p116 = scmp.eq.s32.totalorder %s23, 0
      %p117 = por %p115, %p116
      %p118 = scmp.ne.s32.totalorder %s104, %s105
      %p119 = scmp.eq.s32.totalorder %s24, 1
      %p120 = por %p118, %p119
      %p122 = scmp.ne.s32.totalorder %s105, %s121
      %p123 = scmp.eq.s32.totalorder %s24, 0
      %p124 = por %p122, %p123
      %p125 = scmp.le.s32.totalorder 1, %s18
      %p126 = scmp.lt.s32.totalorder %s18, 3
      %p127 = pnand %p125, %p126
      %p128 = pneg %p127
      // Predicated region
      $region9: #{tpu_custom_call.1} parent=5 // pred_check
        _
      $region10: #{tpu_custom_call.1} parent=5 // pred_check_branch
        %130 = sbr.rel (%p127) target = $region12
      $region11: #{tpu_custom_call.1} parent=5 // pred_region
        %s131 = ssub.s32 %s18, 1
        // Predicated region
        $region13: #{tpu_custom_call.1} parent=11 // pred_check
          %p132 = pneg %p91
        $region14: #{tpu_custom_call.1} parent=11 // pred_check_branch
          %134 = sbr.rel (%p132) target = $region16
        $region15: #{tpu_custom_call.1} parent=11 // pred_region
          %136 = vsyncadd [#allocation6], 0
          %s138 = sshll.u32 %s2, 4
          %s139 = int_to_ptr.hbm [resolvable:$true] %s138
          %s140 = sshll.u32 [#allocation7], 4
          %s141 = int_to_ptr.vmem [resolvable:$true] %s140
          %143 = dma.hbm_to_vmem [thread:$0]  %s139, 32, %s141, [#allocation6]
        $region16: #{tpu_custom_call.1} parent=11 // pred_fallthru
          _
      $region12: #{tpu_custom_call.1} parent=5 // pred_fallthru
        _
      %p144 = scmp.lt.s32.totalorder %s18, 2
      // Predicated region
      $region17: #{tpu_custom_call.1} parent=5 // pred_check
        %p145 = pneg %p144
      $region18: #{tpu_custom_call.1} parent=5 // pred_check_branch
        %147 = sbr.rel (%p145) target = $region20
      $region19: #{tpu_custom_call.1} parent=5 // pred_region
        // Predicated region
        $region21: #{tpu_custom_call.1} parent=19 // pred_check
          %p148 = pneg %p38
        $region22: #{tpu_custom_call.1} parent=19 // pred_check_branch
          %150 = sbr.rel (%p148) target = $region24
        $region23: #{tpu_custom_call.1} parent=19 // pred_region
          %s151 = sand.u32 %s28, 1
          %s152 = scalar_lea.sflag [#allocation3], %s151
          %s153 = sand.u32 %s28, 1
          %s154 = smul.addr %s153, 8
          %s155 = scalar_lea.vmem [#allocation2], %s154
          %157 = vsyncadd %s152, 0
          %s158 = smul.addr %s18, 8
          %s159 = scalar_lea.hbm %s0, %s158
          %s161 = sshll.u32 %s159, 4
          %s162 = int_to_ptr.hbm [resolvable:$true] %s161
          %s163 = sshll.u32 %s155, 4
          %s164 = int_to_ptr.vmem [resolvable:$true] %s163
          %166 = dma.hbm_to_vmem [thread:$0]  %s162, 128, %s164, %s152
        $region24: #{tpu_custom_call.1} parent=19 // pred_fallthru
          _
        // Predicated region
        $region25: #{tpu_custom_call.1} parent=19 // pred_check
          %p167 = pneg %p64
        $region26: #{tpu_custom_call.1} parent=19 // pred_check_branch
          %169 = sbr.rel (%p167) target = $region28
        $region27: #{tpu_custom_call.1} parent=19 // pred_region
          %s170 = sand.u32 %s18, 1
          %s171 = scalar_lea.sflag [#allocation6], %s170
          %s172 = sand.u32 %s54, 1
          %s173 = smul.addr %s172, 8
          %s174 = scalar_lea.vmem [#allocation5], %s173
          %176 = vsyncadd %s171, 0
          %s177 = smul.addr %s18, 8
          %s178 = scalar_lea.hbm %s1, %s177
          %s180 = sshll.u32 %s178, 4
          %s181 = int_to_ptr.hbm [resolvable:$true] %s180
          %s182 = sshll.u32 %s174, 4
          %s183 = int_to_ptr.vmem [resolvable:$true] %s182
          %185 = dma.hbm_to_vmem [thread:$0]  %s181, 128, %s183, %s171
        $region28: #{tpu_custom_call.1} parent=19 // pred_fallthru
          _
      $region20: #{tpu_custom_call.1} parent=5 // pred_fallthru
        _
      %p186 = scmp.le.s32.totalorder 1, %s18
      %p187 = scmp.lt.s32.totalorder %s18, 3
      %p188 = pnand %p186, %p187
      %p189 = pneg %p188
      // Predicated region
      $region29: #{tpu_custom_call.1} parent=5 // pred_check
        _
      $region30: #{tpu_custom_call.1} parent=5 // pred_check_branch
        %191 = sbr.rel (%p188) target = $region32
      $region31: #{tpu_custom_call.1} parent=5 // pred_region
        %s192 = ssub.s32 %s18, 1
        %s193 = sand.u32 %s31, 1
        %s194 = scalar_lea.sflag [#allocation3], %s193
        %s195 = sand.u32 %s31, 1
        %s196 = smul.addr %s195, 8
        %s197 = scalar_lea.vmem [#allocation2], %s196
        // Predicated region
        $region33: #{tpu_custom_call.1} parent=31 // pred_check
          %p198 = pneg %p44
        $region34: #{tpu_custom_call.1} parent=31 // pred_check_branch
          %200 = sbr.rel (%p198) target = $region36
        $region35: #{tpu_custom_call.1} parent=31 // pred_region
          %202 = dma.done %s194, 128
        $region36: #{tpu_custom_call.1} parent=31 // pred_fallthru
          _
        %s203 = sand.u32 %s23, 1
        %s204 = scalar_lea.sflag [#allocation6], %s203
        %s205 = sand.u32 %s57, 1
        %s206 = smul.addr %s205, 8
        %s207 = scalar_lea.vmem [#allocation5], %s206
        // Predicated region
        $region37: #{tpu_custom_call.1} parent=31 // pred_check
          %p208 = pneg %p70
        $region38: #{tpu_custom_call.1} parent=31 // pred_check_branch
          %210 = sbr.rel (%p208) target = $region40
        $region39: #{tpu_custom_call.1} parent=31 // pred_region
          %212 = dma.done %s204, 128
        $region40: #{tpu_custom_call.1} parent=31 // pred_fallthru
          _
        // Predicated region
        $region41: #{tpu_custom_call.1} parent=31 // pred_check
          %p213 = pneg %p91
        $region42: #{tpu_custom_call.1} parent=31 // pred_check_branch
          %215 = sbr.rel (%p213) target = $region44
        $region43: #{tpu_custom_call.1} parent=31 // pred_region
          %217 = dma.done [#allocation6], 32
        $region44: #{tpu_custom_call.1} parent=31 // pred_fallthru
          _
        %s218 = sand.u32 %s31, 1
        %s219 = scalar_lea.sflag [#allocation3], %s218
        %s220 = sand.u32 %s31, 1
        %s221 = smul.addr %s220, 8
        %s222 = scalar_lea.vmem [#allocation2], %s221
        %p223 = pneg %p44
        %p224 = pneg %p41
        %s225 = sand.u32 %s23, 1
        %s226 = scalar_lea.sflag [#allocation6], %s225
        %s227 = sand.u32 %s57, 1
        %s228 = smul.addr %s227, 8
        %s229 = scalar_lea.vmem [#allocation5], %s228
        %p230 = pneg %p70
        %p231 = pneg %p67
        %p232 = pneg %p91
        %p233 = pneg %p88
        %p234 = pneg %p117
        %p235 = pneg %p114
        %s236 = sand.u32 %s104, 1
        %s237 = scalar_lea.sflag [#allocation4], %s236
        %s238 = sand.u32 %s104, 1
        %s239 = smul.addr %s238, 8
        %s240 = scalar_lea.vmem [#allocation8], %s239
        %v241 = vld [vmem:[#allocation7] sm:$0x1]
        %v242 = vld [vmem:[#allocation7 + $0x1] sm:$0x1]
        %v243 = vld [vmem:[%s207] sm:$0xff]
        %v244 = vld [vmem:[%s197] sm:$0xff]
        %v245 = vadd.f32 %v243, %v244
        %246 = vadd.xlane.f32.xlu0 %v245
        %v247 = vpop.xlane.xlu0 %246
        %v248 = vrcp.pop 128.0
        %v249 = vmul.f32 128.0, %v248
        %v250 = vsub.f32 1.0, %v249
        %v251 = vmul.f32 %v248, %v250
        %v252 = vadd.f32 %v248, %v251
        %vm253 = vweird.f32 %v248
        %v254 = vsel %vm253, %v248, %v252
        %v255 = vmul.f32 %v247, %v254
        %v256 = vsub.f32 %v245, %v255
        %v257 = vmul.f32 %v256, %v256
        %258 = vadd.xlane.f32.xlu0 %v257
        %v259 = vpop.xlane.xlu0 %258
        %v260 = vmul.f32 %v259, %v254
        %v261 = vadd.f32 %v260, 1e-05
        %v262 = vrsqrt.pop %v261
        %v263 = vmul.f32 %v262, %v261
        %v264 = vmul.f32 %v263, %v262
        %v265 = vmul.f32 0.5, %v264
        %v266 = vsub.f32 1.5, %v265
        %v267 = vmul.f32 %v262, %v266
        %vm268 = vweird.f32 %v261
        %vm269 = vweird.f32 %v262
        %vm270 = vmor %vm268, %vm269
        %v271 = vsel %vm270, %v262, %v267
        %v272 = vmul.f32 %v256, %v271
        %v273 = vperm.slane %v241, 0
        %v274 = vmul.f32 %v272, %v273
        %v275 = vperm.slane %v242, 0
        %v276 = vadd.f32 %v274, %v275
        %277 = vst [vmem:[%s240] sm:$0xff] %v276
        %s278 = sand.u32 %s104, 1
        %s279 = scalar_lea.sflag [#allocation4], %s278
        %s280 = sand.u32 %s104, 1
        %s281 = smul.addr %s280, 8
        %s282 = scalar_lea.vmem [#allocation8], %s281
        // Predicated region
        $region45: #{tpu_custom_call.1} parent=31 // pred_check
          %p283 = pneg %p114
        $region46: #{tpu_custom_call.1} parent=31 // pred_check_branch
          %285 = sbr.rel (%p283) target = $region48
        $region47: #{tpu_custom_call.1} parent=31 // pred_region
          %287 = vsyncadd %s279, 0
          %s288 = smul.addr %s23, 8
          %s289 = scalar_lea.hbm %s3, %s288
          %s291 = sshll.u32 %s282, 4
          %s292 = int_to_ptr.vmem [resolvable:$true] %s291
          %s293 = sshll.u32 %s289, 4
          %s294 = int_to_ptr.hbm [resolvable:$true] %s293
          %296 = dma.vmem_to_hbm [thread:$0]  %s292, 128, %s294, %s279
        $region48: #{tpu_custom_call.1} parent=31 // pred_fallthru
          _
      $region32: #{tpu_custom_call.1} parent=5 // pred_fallthru
        _
      %p297 = scmp.le.s32.totalorder 2, %s18
      // Predicated region
      $region49: #{tpu_custom_call.1} parent=5 // pred_check
        %p298 = pneg %p297
      $region50: #{tpu_custom_call.1} parent=5 // pred_check_branch
        %300 = sbr.rel (%p298) target = $region52
      $region51: #{tpu_custom_call.1} parent=5 // pred_region
        %s301 = ssub.s32 %s18, 2
        // Predicated region
        $region53: #{tpu_custom_call.1} parent=51 // pred_check
          %p302 = pneg %p120
        $region54: #{tpu_custom_call.1} parent=51 // pred_check_branch
          %304 = sbr.rel (%p302) target = $region56
        $region55: #{tpu_custom_call.1} parent=51 // pred_region
          %s305 = sand.u32 %s105, 1
          %s306 = scalar_lea.sflag [#allocation4], %s305
          %s307 = sand.u32 %s105, 1
          %s308 = smul.addr %s307, 8
          %s309 = scalar_lea.vmem [#allocation8], %s308
          %311 = dma.done %s306, 128
        $region56: #{tpu_custom_call.1} parent=51 // pred_fallthru
          _
      $region52: #{tpu_custom_call.1} parent=5 // pred_fallthru
        _
    $region6: #{tpu_custom_call.1} parent=1 // loop_footer
      %s22 = sadd.s32 1, %s18
    $region7: #{tpu_custom_call.1} parent=1 // loop_footer_branch
      %17 = sbr.rel target = $region3
    $region8: #{tpu_custom_call.1} parent=1 // loop_exit
      _
    %312 = vsyncpa [#allocation3], 1
    %s313 = scalar_lea.sflag [#allocation3], 1
    %314 = vsyncpa %s313, 1
    %315 = vsyncpa [#allocation6], 1
    %s316 = scalar_lea.sflag [#allocation6], 1
    %317 = vsyncpa %s316, 1
    %318 = vsyncpa [#allocation4], 1
    %s319 = scalar_lea.sflag [#allocation4], 1
    %320 = vsyncpa %s319, 1

</llo_original>
